<compile_context>
chip_gen: v5e
topology: v5e:2x2
jax: 0.10.0
libtpu: 0.0.40
codegen_flags: <defaults>
</compile_context>

<pallas_src>
import functools

import jax
import jax.numpy as jnp
from jax.experimental import pallas as pl
from jax.experimental.pallas import tpu as pltpu


def _round_up(x, m):
    return (x + m - 1) // m * m


# ---------------------------------------------------------------------------
# Device-derived tuning knobs (computed once; defensive fallbacks).
# ---------------------------------------------------------------------------
def _vmem_capacity_bytes():
    try:
        return int(pltpu.get_tpu_info().vmem_capacity_bytes)
    except Exception:
        return 64 * 1024 * 1024          # v7x-safe lower bound


def _multi_tensorcore():
    # v7x (and v4/v5p) expose multiple TensorCores per device -> keep >= 2 M
    # grid steps so all cores get work. Single-TC chips (v5e/v6e) should not
    # pay the extra per-step overhead / weight re-fetches.
    try:
        kind = jax.devices()[0].device_kind.lower()
    except Exception:
        return True                      # conservative default
    single_tc = any(t in kind for t in ("lite", "v5e", "v6", "v2", "v3"))
    return not single_tc


_VMEM_CAP = _vmem_capacity_bytes()
_TILE_BUDGET = min(_VMEM_CAP // 2, 28 * 1024 * 1024)   # double-buffered tile bytes
_MULTI_TC = _multi_tensorcore()


def _vmem_tile_bytes(tm, tk, oc_pad, with_acc):
    need = 2 * tm * tk * 2               # patches tile, bf16, double-buffered
    need += 2 * tk * oc_pad * 2          # weight tile,  bf16, double-buffered
    need += 2 * 2 * oc_pad * 4           # scale + shift, f32, double-buffered
    need += 2 * tm * oc_pad * 4          # output tile,  f32, double-buffered
    if with_acc:
        need += tm * oc_pad * 4          # f32 accumulator scratch
    return need


# ---------------------------------------------------------------------------
# Kernels
# ---------------------------------------------------------------------------
def _conv_bn_kernel(p_ref, w_ref, scale_ref, shift_ref, o_ref):
    """Un-tiled K: single matmul, BN scale/shift applied on the f32 result."""
    acc = jnp.dot(p_ref[...], w_ref[...], preferred_element_type=jnp.float32)
    o_ref[...] = (acc * scale_ref[...] + shift_ref[...]).astype(o_ref.dtype)


def _conv_bn_kernel_ktiled(p_ref, w_ref, scale_ref, shift_ref, o_ref, acc_ref):
    """Tiled K: f32 VMEM accumulator with pl.when init/finalize."""
    kk = pl.program_id(1)

    @pl.when(kk == 0)
    def _():
        acc_ref[...] = jnp.zeros_like(acc_ref)

    acc_ref[...] += jnp.dot(p_ref[...], w_ref[...],
                            preferred_element_type=jnp.float32)

    @pl.when(kk == pl.num_programs(1) - 1)
    def _():
        o_ref[...] = (acc_ref[...] * scale_ref[...]
                      + shift_ref[...]).astype(o_ref.dtype)


# ---------------------------------------------------------------------------
# Glue
# ---------------------------------------------------------------------------
def _im2col_nchw(x, kh, kw, stride, padding, dilation):
    """NCHW -> patches [N*OH*OW, C*KH*KW] (K ordering: c-major, then kh, kw)."""
    n, c, h, w = x.shape
    xp = jnp.pad(x, ((0, 0), (0, 0), (padding, padding), (padding, padding)))
    oh = (h + 2 * padding - dilation * (kh - 1) - 1) // stride + 1
    ow = (w + 2 * padding - dilation * (kw - 1) - 1) // stride + 1
    cols = []
    for i in range(kh):
        for j in range(kw):
            hi, wj = i * dilation, j * dilation
            cols.append(
                xp[:, :, hi:hi + stride * oh:stride, wj:wj + stride * ow:stride])
    cols = jnp.stack(cols, axis=0)          # (KH*KW, N, C, OH, OW)
    cols = cols.transpose(1, 3, 4, 2, 0)    # (N, OH, OW, C, KH*KW)
    return cols.reshape(n * oh * ow, c * kh * kw), oh, ow


@functools.partial(jax.jit,
                   static_argnames=("kernel_size", "stride", "padding", "dilation"))
def basic_conv2d(x, weight, gamma, beta, running_mean, running_var,
                 *, kernel_size, stride=1, padding=0, dilation=1, eps=1e-5):
    """Forward of BasicConv2d: BN(conv(x)), no bias, no ReLU (matches torch forward).

    x:      (N, C_in, H, W)        float32, NCHW
    weight: (C_out, C_in, KH, KW)  PyTorch conv weight layout
    """
    kh = kw = kernel_size
    n, c_in, h, w = x.shape
    c_out = weight.shape[0]

    # bf16 im2col: cast BEFORE building patches so the duplicated intermediate
    # never touches HBM in f32.
    patches, oh, ow = _im2col_nchw(x.astype(jnp.bfloat16), kh, kw,
                                   stride, padding, dilation)      # (M, K) bf16
    m, k = patches.shape

    # Eval-mode BN -> per-channel scale/shift, applied in the f32 epilogue.
    inv_std = jax.lax.rsqrt(running_var.astype(jnp.float32) + eps)
    scale = gamma.astype(jnp.float32) * inv_std                    # (C_out,)
    shift = beta.astype(jnp.float32) - running_mean.astype(jnp.float32) * scale

    # Weight matrix [K, C_out] with the same K ordering as patches.
    w_mat = weight.reshape(c_out, c_in * kh * kw).T.astype(jnp.bfloat16)

    # ---- tiling (VMEM-budget driven, per-generation) -----------------------
    oc_pad = _round_up(c_out, 128)       # lane-dense stores, full MXU columns
    k_pad1 = _round_up(k, 128) if k >= 128 else _round_up(k, 16)

    tm_cap = min(1024, _round_up(m, 128))
    candidates = [t for t in (1024, 512, 256, 128) if t <= tm_cap] or [128]

    tm = None
    for cand in candidates:              # prefer un-tiled K: weights DMA'd once
        if _vmem_tile_bytes(cand, k_pad1, oc_pad, False) <= _TILE_BUDGET:
            tm, tk, k_pad, nk = cand, k_pad1, k_pad1, 1
            break
    if tm is None:                       # very large K*OC -> tile K, add accumulator
        tk = 512
        k_pad = _round_up(k, tk)
        nk = k_pad // tk
        tm = candidates[-1]
        for cand in candidates:
            if _vmem_tile_bytes(cand, tk, oc_pad, True) <= _TILE_BUDGET:
                tm = cand
                break

    if _MULTI_TC:                        # v7x: keep >= 2 M steps for both TCs
        while tm > 128 and _round_up(m, tm) // tm < 2:
            tm //= 2
    m_pad = _round_up(m, tm)
    m_steps = m_pad // tm

    # ---- padding (single fused pad per operand), bf16 operands -------------
    if (m_pad, k_pad) != (m, k):
        patches = jnp.pad(patches, ((0, m_pad - m), (0, k_pad - k)))
    # Padded weight / scale / shift columns are ZERO -> padded channels stay 0.
    w_mat = jnp.pad(w_mat, ((0, k_pad - k), (0, oc_pad - c_out)))
    scale_p = jnp.pad(scale.reshape(1, c_out), ((0, 0), (0, oc_pad - c_out)))
    shift_p = jnp.pad(shift.reshape(1, c_out), ((0, 0), (0, oc_pad - c_out)))

    vmem_need = _vmem_tile_bytes(tm, tk, oc_pad, nk > 1)
    vmem_limit = int(min(max(vmem_need + (4 << 20), 16 << 20),
                         max(_VMEM_CAP - (8 << 20), 32 << 20)))

    weight_fetches = m_steps if nk > 1 else 1   # resident when K is un-tiled
    cost = pl.CostEstimate(
        flops=2 * m_pad * k_pad * oc_pad,
        transcendentals=0,
        bytes_accessed=(patches.size * 2
                        + w_mat.size * 2 * weight_fetches
                        + (scale_p.size + shift_p.size) * 4
                        + m_pad * oc_pad * 4),
    )

    if nk == 1:
        out = pl.pallas_call(
            _conv_bn_kernel,
            out_shape=jax.ShapeDtypeStruct((m_pad, oc_pad), jnp.float32),
            grid_spec=pltpu.PrefetchScalarGridSpec(
                num_scalar_prefetch=0,
                grid=(m_steps,),
                in_specs=[
                    pl.BlockSpec((tm, k_pad), lambda i: (i, 0)),
                    pl.BlockSpec((k_pad, oc_pad), lambda i: (0, 0)),
                    pl.BlockSpec((1, oc_pad), lambda i: (0, 0)),
                    pl.BlockSpec((1, oc_pad), lambda i: (0, 0)),
                ],
                out_specs=pl.BlockSpec((tm, oc_pad), lambda i: (i, 0)),
            ),
            compiler_params=pltpu.CompilerParams(
                dimension_semantics=("parallel",),
                vmem_limit_bytes=vmem_limit),
            cost_estimate=cost,
        )(patches, w_mat, scale_p, shift_p)
    else:
        out = pl.pallas_call(
            _conv_bn_kernel_ktiled,
            out_shape=jax.ShapeDtypeStruct((m_pad, oc_pad), jnp.float32),
            grid_spec=pltpu.PrefetchScalarGridSpec(
                num_scalar_prefetch=0,
                grid=(m_steps, nk),
                in_specs=[
                    pl.BlockSpec((tm, tk), lambda i, kk: (i, kk)),
                    pl.BlockSpec((tk, oc_pad), lambda i, kk: (kk, 0)),
                    pl.BlockSpec((1, oc_pad), lambda i, kk: (0, 0)),
                    pl.BlockSpec((1, oc_pad), lambda i, kk: (0, 0)),
                ],
                out_specs=pl.BlockSpec((tm, oc_pad), lambda i, kk: (i, 0)),
                scratch_shapes=[pltpu.VMEM((tm, oc_pad), jnp.float32)],
            ),
            compiler_params=pltpu.CompilerParams(
                dimension_semantics=("parallel", "arbitrary"),
                vmem_limit_bytes=vmem_limit),
            cost_estimate=cost,
        )(patches, w_mat, scale_p, shift_p)

    out = out[:m, :c_out]                                       # drop M/OC padding
    return out.reshape(n, oh, ow, c_out).transpose(0, 3, 1, 2)  # NCHW, f32


def _reference(x, weight, gamma, beta, running_mean, running_var,
               *, kernel_size, stride, padding, dilation, eps=1e-5):
    y = jax.lax.conv_general_dilated(
        x, weight,
        window_strides=(stride, stride),
        padding=[(padding, padding), (padding, padding)],
        rhs_dilation=(dilation, dilation),
        dimension_numbers=("NCHW", "OIHW", "NCHW"),
    )
    inv_std = jax.lax.rsqrt(running_var + eps)
    scale = (gamma * inv_std)[None, :, None, None]
    shift = (beta - running_mean * gamma * inv_std)[None, :, None, None]
    return y * scale + shift


if __name__ == "__main__":
    key = jax.random.PRNGKey(0)
    k1, k2, k3, k4, k5 = jax.random.split(key, 5)

    # Small shapes consistent with the module: in_planes=4, out_planes=8, 3x3, pad=1.
    N, C_IN, H, W = 2, 4, 16, 16
    C_OUT, KS, STRIDE, PAD, DIL = 8, 3, 1, 1, 1

    x = jax.random.normal(k1, (N, C_IN, H, W), dtype=jnp.float32)
    weight = jax.random.normal(k2, (C_OUT, C_IN, KS, KS), dtype=jnp.float32) * 0.1
    gamma = 1.0 + 0.1 * jax.random.normal(k3, (C_OUT,), dtype=jnp.float32)
    beta = 0.1 * jax.random.normal(k4, (C_OUT,), dtype=jnp.float32)
    running_mean = 0.05 * jax.random.normal(k5, (C_OUT,), dtype=jnp.float32)
    running_var = jnp.ones((C_OUT,), dtype=jnp.float32) * 1.2

    out = basic_conv2d(x, weight, gamma, beta, running_mean, running_var,
                       kernel_size=KS, stride=STRIDE, padding=PAD, dilation=DIL)
    out = jax.block_until_ready(out)

    ref = _reference(x, weight, gamma, beta, running_mean, running_var,
                     kernel_size=KS, stride=STRIDE, padding=PAD, dilation=DIL)
    assert out.shape == (N, C_OUT, H, W), out.shape
    # bf16 operands with f32 accumulation; BN scale/shift applied in f32.
    assert jnp.allclose(out, ref, atol=3e-2, rtol=3e-2), float(jnp.abs(out - ref).max())

    print("KERNEL_OK")
</pallas_src>

<mosaic_0001>
module attributes {stable_mosaic.version = 11 : i64} {
  func.func @_conv_bn_kernel(%arg0: i32, %arg1: memref<256x48xbf16, #tpu.memory_space<vmem>>, %arg2: memref<48x128xbf16, #tpu.memory_space<vmem>>, %arg3: memref<1x128xf32, #tpu.memory_space<vmem>>, %arg4: memref<1x128xf32, #tpu.memory_space<vmem>>, %arg5: memref<256x128xf32, #tpu.memory_space<vmem>>) attributes {dimension_semantics = [#tpu.dimension_semantics<parallel>], iteration_bounds = array<i64: 2>, scalar_prefetch = 0 : i64, scratch_operands = 0 : i64, tpu.core_type = #tpu.core_type<tc>, window_params = [{transform_indices = @transform_0, window_bounds = array<i64: 256, 48>}, {pipeline_mode = #tpu.pipeline_mode<synchronous>, transform_indices = @transform_1, window_bounds = array<i64: 48, 128>}, {pipeline_mode = #tpu.pipeline_mode<synchronous>, transform_indices = @transform_2, window_bounds = array<i64: 1, 128>}, {pipeline_mode = #tpu.pipeline_mode<synchronous>, transform_indices = @transform_3, window_bounds = array<i64: 1, 128>}, {transform_indices = @transform_4, window_bounds = array<i64: 256, 128>}]} {
    %c0 = arith.constant 0 : index
    %c0_0 = arith.constant 0 : index
    %0 = vector.load %arg1[%c0, %c0_0] : memref<256x48xbf16, #tpu.memory_space<vmem>>, vector<256x48xbf16>
    %c0_1 = arith.constant 0 : index
    %c0_2 = arith.constant 0 : index
    %1 = vector.load %arg2[%c0_1, %c0_2] : memref<48x128xbf16, #tpu.memory_space<vmem>>, vector<48x128xbf16>
    %cst = arith.constant dense<0.000000e+00> : vector<256x128xf32>
    %2 = tpu.matmul %0, %1, %cst {dimension_numbers = #tpu.dot_dimension_numbers<[1], [0], [0], [1], [0, 0, 1, 1], [], []>} : vector<256x48xbf16>, vector<48x128xbf16>, vector<256x128xf32> -> vector<256x128xf32>
    %c0_3 = arith.constant 0 : index
    %c0_4 = arith.constant 0 : index
    %3 = vector.load %arg3[%c0_3, %c0_4] : memref<1x128xf32, #tpu.memory_space<vmem>>, vector<1x128xf32>
    %4 = vector.broadcast %3 : vector<1x128xf32> to vector<256x128xf32>
    %5 = arith.mulf %2, %4 : vector<256x128xf32>
    %c0_5 = arith.constant 0 : index
    %c0_6 = arith.constant 0 : index
    %6 = vector.load %arg4[%c0_5, %c0_6] : memref<1x128xf32, #tpu.memory_space<vmem>>, vector<1x128xf32>
    %7 = vector.broadcast %6 : vector<1x128xf32> to vector<256x128xf32>
    %8 = arith.addf %5, %7 : vector<256x128xf32>
    %c0_7 = arith.constant 0 : index
    %c0_8 = arith.constant 0 : index
    %9 = vector.load %arg5[%c0_7, %c0_8] : memref<256x128xf32, #tpu.memory_space<vmem>>, vector<256x128xf32>
    tpu.vector_store %arg5[%c0_7, %c0_8], %8 {strides = array<i32>} : memref<256x128xf32, #tpu.memory_space<vmem>>, vector<256x128xf32>,
    return
  }
  func.func @transform_0(%arg0: i32) -> (i32, i32) {
    %c0_i32 = arith.constant 0 : i32
    %c0_i32_0 = arith.constant 0 : i32
    return %arg0, %c0_i32 : i32, i32
  }
  func.func @transform_1(%arg0: i32) -> (i32, i32) {
    %c0_i32 = arith.constant 0 : i32
    %c0_i32_0 = arith.constant 0 : i32
    %c0_i32_1 = arith.constant 0 : i32
    return %c0_i32, %c0_i32_0 : i32, i32
  }
  func.func @transform_2(%arg0: i32) -> (i32, i32) {
    %c0_i32 = arith.constant 0 : i32
    %c0_i32_0 = arith.constant 0 : i32
    %c0_i32_1 = arith.constant 0 : i32
    return %c0_i32, %c0_i32_0 : i32, i32
  }
  func.func @transform_3(%arg0: i32) -> (i32, i32) {
    %c0_i32 = arith.constant 0 : i32
    %c0_i32_0 = arith.constant 0 : i32
    %c0_i32_1 = arith.constant 0 : i32
    return %c0_i32, %c0_i32_0 : i32, i32
  }
  func.func @transform_4(%arg0: i32) -> (i32, i32) {
    %c0_i32 = arith.constant 0 : i32
    %c0_i32_0 = arith.constant 0 : i32
    return %arg0, %c0_i32 : i32, i32
  }
}

</mosaic_0001>

<llo_original>
// kernel: basic_conv2d.1
$region0: #{basic_conv2d.1}
  #allocation0 [shape = 'u32[]', space=smem, size = 0x4, offset = 0x4, fixed_abs, tag = 'smem constant byte address 0x4 - core index']
  #allocation1 [shape = 'u32[72,128]{1,0:T(1,128)}', space=vmem, size = 0x9000, scoped, tag = 'internal scratch']
  %s0 = inlined_call_operand.vmem [shape: bf16[512,48], index: 0, kind: input, shape index: {}]
  %s1 = inlined_call_operand.vmem [shape: bf16[48,128], index: 1, kind: input, shape index: {}]
  %s2 = inlined_call_operand.vmem [shape: f32[1,128], index: 2, kind: input, shape index: {}]
  %s3 = inlined_call_operand.vmem [shape: f32[1,128], index: 3, kind: input, shape index: {}]
  %s4 = inlined_call_operand.vmem [shape: f32[512,128], index: 4, kind: output, shape index: {}]
  %s5 = sld [smem:[#allocation0]]
  $region49: #{basic_conv2d.1} parent=0
    _
  %s7 = ssub.s32 1, %s5
  %s8 = scalar_select 0, %s7, %s5
  loop: start=0, step=1, limit=4
  $region2: #{basic_conv2d.1} parent=0 // loop_pre_header
    _
  $region3: #{basic_conv2d.1} parent=0 // loop_header
    %s10 = sphi 0, %s14
    %p11 = scmp.ge.s32.totalorder %s10, 4
    %s20 = sphi 0, %s22
    %s23 = sphi 0, %s20
    %s24 = sphi 0, %s23
    %s40 = sphi 0, %s24
    %s44 = sphi 0, %s44
    %s46 = sphi 0, %s44
    %s47 = sphi 0, %s46
    %s61 = sphi 0, %s47
    %s65 = sphi 0, %s65
    %s67 = sphi 0, %s65
    %s68 = sphi 0, %s67
    %s82 = sphi 0, %s68
    %s86 = sphi 0, %s86
    %s88 = sphi 0, %s86
    %s89 = sphi 0, %s88
    %s103 = sphi 0, %s89
    %s109 = sphi 0, %s111
    %s112 = sphi 0, %s109
    %s113 = sphi 0, %s112
    %s129 = sphi 0, %s113
  $region4: #{basic_conv2d.1} parent=0 // loop_header_branch
    %13 = sbr.rel (%p11) target = $region8
  $region5: #{basic_conv2d.1} parent=0 // loop_body
    %s15 = ssub.s32 %s10, 1
    %s16 = ssub.s32 %s10, 2
    %s17 = sadd.s32 %s10, 1
    %s18 = ssub.s32 %s10, %s17
    %p19 = scmp.eq.s32.totalorder %s18, 0
    %s21 = sadd.s32 %s20, 1
    %s22 = scalar_select %p19, %s20, %s21
    %p25 = pneg %p19
    %p26 = scmp.eq.s32.totalorder %s10, 1
    %p27 = por %p25, %p26
    %p28 = scmp.ne.s32.totalorder %s20, %s23
    %p29 = scmp.eq.s32.totalorder %s10, 0
    %p30 = por %p28, %p29
    %p31 = scmp.ne.s32.totalorder %s20, %s23
    %p32 = scmp.eq.s32.totalorder %s15, 1
    %p33 = por %p31, %p32
    %p34 = scmp.ne.s32.totalorder %s23, %s24
    %p35 = scmp.eq.s32.totalorder %s15, 0
    %p36 = por %p34, %p35
    %p37 = scmp.ne.s32.totalorder %s23, %s24
    %p38 = scmp.eq.s32.totalorder %s16, 1
    %p39 = por %p37, %p38
    %p41 = scmp.ne.s32.totalorder %s24, %s40
    %p42 = scmp.eq.s32.totalorder %s16, 0
    %p43 = por %p41, %p42
    %s45 = sadd.s32 %s44, 1
    %p48 = scmp.eq.s32.totalorder %s10, 1
    %p49 = scmp.ne.s32.totalorder %s44, %s46
    %p50 = scmp.eq.s32.totalorder %s10, 0
    %p51 = por %p49, %p50
    %p52 = scmp.ne.s32.totalorder %s44, %s46
    %p53 = scmp.eq.s32.totalorder %s15, 1
    %p54 = por %p52, %p53
    %p55 = scmp.ne.s32.totalorder %s46, %s47
    %p56 = scmp.eq.s32.totalorder %s15, 0
    %p57 = por %p55, %p56
    %p58 = scmp.ne.s32.totalorder %s46, %s47
    %p59 = scmp.eq.s32.totalorder %s16, 1
    %p60 = por %p58, %p59
    %p62 = scmp.ne.s32.totalorder %s47, %s61
    %p63 = scmp.eq.s32.totalorder %s16, 0
    %p64 = por %p62, %p63
    %s66 = sadd.s32 %s65, 1
    %p69 = scmp.eq.s32.totalorder %s10, 1
    %p70 = scmp.ne.s32.totalorder %s65, %s67
    %p71 = scmp.eq.s32.totalorder %s10, 0
    %p72 = por %p70, %p71
    %p73 = scmp.ne.s32.totalorder %s65, %s67
    %p74 = scmp.eq.s32.totalorder %s15, 1
    %p75 = por %p73, %p74
    %p76 = scmp.ne.s32.totalorder %s67, %s68
    %p77 = scmp.eq.s32.totalorder %s15, 0
    %p78 = por %p76, %p77
    %p79 = scmp.ne.s32.totalorder %s67, %s68
    %p80 = scmp.eq.s32.totalorder %s16, 1
    %p81 = por %p79, %p80
    %p83 = scmp.ne.s32.totalorder %s68, %s82
    %p84 = scmp.eq.s32.totalorder %s16, 0
    %p85 = por %p83, %p84
    %s87 = sadd.s32 %s86, 1
    %p90 = scmp.eq.s32.totalorder %s10, 1
    %p91 = scmp.ne.s32.totalorder %s86, %s88
    %p92 = scmp.eq.s32.totalorder %s10, 0
    %p93 = por %p91, %p92
    %p94 = scmp.ne.s32.totalorder %s86, %s88
    %p95 = scmp.eq.s32.totalorder %s15, 1
    %p96 = por %p94, %p95
    %p97 = scmp.ne.s32.totalorder %s88, %s89
    %p98 = scmp.eq.s32.totalorder %s15, 0
    %p99 = por %p97, %p98
    %p100 = scmp.ne.s32.totalorder %s88, %s89
    %p101 = scmp.eq.s32.totalorder %s16, 1
    %p102 = por %p100, %p101
    %p104 = scmp.ne.s32.totalorder %s89, %s103
    %p105 = scmp.eq.s32.totalorder %s16, 0
    %p106 = por %p104, %p105
    %s107 = ssub.s32 %s10, %s17
    %p108 = scmp.eq.s32.totalorder %s107, 0
    %s110 = sadd.s32 %s109, 1
    %s111 = scalar_select %p108, %s109, %s110
    %p114 = pneg %p108
    %p115 = scmp.eq.s32.totalorder %s10, 1
    %p116 = por %p114, %p115
    %p117 = scmp.ne.s32.totalorder %s109, %s112
    %p118 = scmp.eq.s32.totalorder %s10, 0
    %p119 = por %p117, %p118
    %p120 = scmp.ne.s32.totalorder %s109, %s112
    %p121 = scmp.eq.s32.totalorder %s15, 1
    %p122 = por %p120, %p121
    %p123 = scmp.ne.s32.totalorder %s112, %s113
    %p124 = scmp.eq.s32.totalorder %s15, 0
    %p125 = por %p123, %p124
    %p126 = scmp.ne.s32.totalorder %s112, %s113
    %p127 = scmp.eq.s32.totalorder %s16, 1
    %p128 = por %p126, %p127
    %p130 = scmp.ne.s32.totalorder %s113, %s129
    %p131 = scmp.eq.s32.totalorder %s16, 0
    %p132 = por %p130, %p131
    %p133 = scmp.le.s32.totalorder 1, %s10
    %p134 = scmp.lt.s32.totalorder %s10, 3
    %p135 = pnand %p133, %p134
    %p136 = pneg %p135
    // Predicated region
    $region9: #{basic_conv2d.1} parent=5 // pred_check
      _
    $region10: #{basic_conv2d.1} parent=5 // pred_check_branch
      %138 = sbr.rel (%p135) target = $region12
    $region11: #{basic_conv2d.1} parent=5 // pred_region
      %s139 = ssub.s32 %s10, 1
      // Predicated region
      $region13: #{basic_conv2d.1} parent=11 // pred_check
        %p140 = pneg %p57
      $region14: #{basic_conv2d.1} parent=11 // pred_check_branch
        %142 = sbr.rel (%p140) target = $region16
      $region15: #{basic_conv2d.1} parent=11 // pred_region
        _
      $region16: #{basic_conv2d.1} parent=11 // pred_fallthru
        _
      // Predicated region
      $region17: #{basic_conv2d.1} parent=11 // pred_check
        %p143 = pneg %p78
      $region18: #{basic_conv2d.1} parent=11 // pred_check_branch
        %145 = sbr.rel (%p143) target = $region20
      $region19: #{basic_conv2d.1} parent=11 // pred_region
        _
      $region20: #{basic_conv2d.1} parent=11 // pred_fallthru
        _
      // Predicated region
      $region21: #{basic_conv2d.1} parent=11 // pred_check
        %p146 = pneg %p99
      $region22: #{basic_conv2d.1} parent=11 // pred_check_branch
        %148 = sbr.rel (%p146) target = $region24
      $region23: #{basic_conv2d.1} parent=11 // pred_region
        _
      $region24: #{basic_conv2d.1} parent=11 // pred_fallthru
        _
    $region12: #{basic_conv2d.1} parent=5 // pred_fallthru
      _
    %p149 = scmp.lt.s32.totalorder %s10, 2
    // Predicated region
    $region25: #{basic_conv2d.1} parent=5 // pred_check
      %p150 = pneg %p149
    $region26: #{basic_conv2d.1} parent=5 // pred_check_branch
      %152 = sbr.rel (%p150) target = $region28
    $region27: #{basic_conv2d.1} parent=5 // pred_region
      // Predicated region
      $region29: #{basic_conv2d.1} parent=27 // pred_check
        %p153 = pneg %p30
      $region30: #{basic_conv2d.1} parent=27 // pred_check_branch
        %155 = sbr.rel (%p153) target = $region32
      $region31: #{basic_conv2d.1} parent=27 // pred_region
        %s156 = smul.u32 32, %s10
        %p157 = scmp.lt.s32.totalorder %s156, 63
        %s158 = scalar_select %p157, %s156, 63
        %s159 = smul.addr %s158, 4
        %s160 = scalar_lea.vmem %s0, %s159
        %s161 = smul.u32 32, %s10
      $region32: #{basic_conv2d.1} parent=27 // pred_fallthru
        _
    $region28: #{basic_conv2d.1} parent=5 // pred_fallthru
      _
    %p162 = scmp.le.s32.totalorder 1, %s10
    %p163 = scmp.lt.s32.totalorder %s10, 3
    %p164 = pnand %p162, %p163
    %p165 = pneg %p164
    // Predicated region
    $region33: #{basic_conv2d.1} parent=5 // pred_check
      _
    $region34: #{basic_conv2d.1} parent=5 // pred_check_branch
      %167 = sbr.rel (%p164) target = $region36
    $region35: #{basic_conv2d.1} parent=5 // pred_region
      %s168 = ssub.s32 %s10, 1
      %s169 = smul.u32 32, %s15
      %p170 = scmp.lt.s32.totalorder %s169, 63
      %s171 = scalar_select %p170, %s169, 63
      %s172 = smul.addr %s171, 4
      %s173 = scalar_lea.vmem %s0, %s172
      %p174 = pneg %p36
      %p175 = pneg %p33
      %p176 = pneg %p57
      %p177 = pneg %p54
      %p178 = pneg %p78
      %p179 = pneg %p75
      %p180 = pneg %p99
      %p181 = pneg %p96
      %p182 = pneg %p125
      %p183 = pneg %p122
      %s184 = smul.u32 32, %s15
      %p185 = scmp.lt.s32.totalorder %s184, 63
      %s186 = scalar_select %p185, %s184, 63
      %s187 = smul.addr %s186, 8
      %s188 = scalar_lea.vmem %s4, %s187
      %s189 = smul.u32 32, %s15
      %p190 = scmp.lt.s32.totalorder %s189, 63
      %s191 = scalar_select %p190, %s189, 63
      %s192 = smul.addr %s191, 4
      %s193 = scalar_lea.vmem %s0, %s192
      %s194 = smul.u32 32, %s15
      %s195 = smul.u32 32, %s15
      %p196 = scmp.lt.s32.totalorder %s195, 63
      %s197 = scalar_select %p196, %s195, 63
      %s198 = smul.addr %s197, 8
      %s199 = scalar_lea.vmem %s4, %s198
      %s200 = smul.u32 32, %s15
      %v202 = vld [vmem:[%s193] sm:$0xf]
      %v203 = vld [vmem:[%s193 + $0x4] sm:$0xf]
      %v204 = vld [vmem:[%s193 + $0x8] sm:$0xf]
      %v205 = vld [vmem:[%s193 + $0xc] sm:$0xf]
      %v206 = vld [vmem:[%s193 + $0x10] sm:$0xf]
      %v207 = vld [vmem:[%s193 + $0x14] sm:$0xf]
      %v208 = vld [vmem:[%s193 + $0x18] sm:$0xf]
      %v209 = vld [vmem:[%s193 + $0x1c] sm:$0xf]
      %v210 = vld [vmem:[%s193 + $0x20] sm:$0xf]
      %v211 = vld [vmem:[%s193 + $0x24] sm:$0xf]
      %v212 = vld [vmem:[%s193 + $0x28] sm:$0xf]
      %v213 = vld [vmem:[%s193 + $0x2c] sm:$0xf]
      %v214 = vld [vmem:[%s193 + $0x30] sm:$0xf]
      %v215 = vld [vmem:[%s193 + $0x34] sm:$0xf]
      %v216 = vld [vmem:[%s193 + $0x38] sm:$0xf]
      %v217 = vld [vmem:[%s193 + $0x3c] sm:$0xf]
      %v218 = vld [vmem:[%s193 + $0x40] sm:$0xf]
      %v219 = vld [vmem:[%s193 + $0x44] sm:$0xf]
      %v220 = vld [vmem:[%s193 + $0x48] sm:$0xf]
      %v221 = vld [vmem:[%s193 + $0x4c] sm:$0xf]
      %v222 = vld [vmem:[%s193 + $0x50] sm:$0xf]
      %v223 = vld [vmem:[%s193 + $0x54] sm:$0xf]
      %v224 = vld [vmem:[%s193 + $0x58] sm:$0xf]
      %v225 = vld [vmem:[%s193 + $0x5c] sm:$0xf]
      %v226 = vld [vmem:[%s193 + $0x60] sm:$0xf]
      %v227 = vld [vmem:[%s193 + $0x64] sm:$0xf]
      %v228 = vld [vmem:[%s193 + $0x68] sm:$0xf]
      %v229 = vld [vmem:[%s193 + $0x6c] sm:$0xf]
      %v230 = vld [vmem:[%s193 + $0x70] sm:$0xf]
      %v231 = vld [vmem:[%s193 + $0x74] sm:$0xf]
      %v232 = vld [vmem:[%s193 + $0x78] sm:$0xf]
      %v233 = vld [vmem:[%s193 + $0x7c] sm:$0xf]
      %v234 = vld [vmem:[%s1] sm:$0xf]
      %v235 = vld [vmem:[%s1 + $0x4] sm:$0xf]
      %v236 = vld [vmem:[%s1 + $0x8] sm:$0xf]
      %v237 = vld [vmem:[%s1 + $0xc] sm:$0xf]
      %v238 = vld [vmem:[%s1 + $0x10] sm:$0xf]
      %v239 = vld [vmem:[%s1 + $0x14] sm:$0xf]
      %v272 = vunpack.c.l.b16 %v202
      %v273 = vunpack.c.l.b16 %v203
      %v274 = vunpack.c.l.b16 %v204
      %v275 = vunpack.c.l.b16 %v205
      %v276 = vunpack.c.l.b16 %v206
      %v277 = vunpack.c.l.b16 %v207
      %v278 = vunpack.c.l.b16 %v208
      %v279 = vunpack.c.l.b16 %v209
      %v280 = vunpack.c.l.b16 %v210
      %v281 = vunpack.c.l.b16 %v211
      %v282 = vunpack.c.l.b16 %v212
      %v283 = vunpack.c.l.b16 %v213
      %v284 = vunpack.c.l.b16 %v214
      %v285 = vunpack.c.l.b16 %v215
      %v286 = vunpack.c.l.b16 %v216
      %v287 = vunpack.c.l.b16 %v217
      %v288 = vunpack.c.l.b16 %v218
      %v289 = vunpack.c.l.b16 %v219
      %v290 = vunpack.c.l.b16 %v220
      %v291 = vunpack.c.l.b16 %v221
      %v292 = vunpack.c.l.b16 %v222
      %v293 = vunpack.c.l.b16 %v223
      %v294 = vunpack.c.l.b16 %v224
      %v295 = vunpack.c.l.b16 %v225
      %v296 = vunpack.c.l.b16 %v226
      %v297 = vunpack.c.l.b16 %v227
      %v298 = vunpack.c.l.b16 %v228
      %v299 = vunpack.c.l.b16 %v229
      %v300 = vunpack.c.l.b16 %v230
      %v301 = vunpack.c.l.b16 %v231
      %v302 = vunpack.c.l.b16 %v232
      %v303 = vunpack.c.l.b16 %v233
      %v304 = vpack.c.b16 %v273, %v272
      %v305 = vpack.c.b16 %v275, %v274
      %v306 = vpack.c.b16 %v277, %v276
      %v307 = vpack.c.b16 %v279, %v278
      %v308 = vpack.c.b16 %v281, %v280
      %v309 = vpack.c.b16 %v283, %v282
      %v310 = vpack.c.b16 %v285, %v284
      %v311 = vpack.c.b16 %v287, %v286
      %v312 = vpack.c.b16 %v289, %v288
      %v313 = vpack.c.b16 %v291, %v290
      %v314 = vpack.c.b16 %v293, %v292
      %v315 = vpack.c.b16 %v295, %v294
      %v316 = vpack.c.b16 %v297, %v296
      %v317 = vpack.c.b16 %v299, %v298
      %v318 = vpack.c.b16 %v301, %v300
      %v319 = vpack.c.b16 %v303, %v302
      %v326 = vunpack.c.l.b16 %v234
      %v327 = vunpack.c.l.b16 %v235
      %v328 = vunpack.c.l.b16 %v236
      %v329 = vunpack.c.l.b16 %v237
      %v330 = vunpack.c.l.b16 %v238
      %v331 = vunpack.c.l.b16 %v239
      %v332 = vpack.c.b16 %v327, %v326
      %v333 = vpack.c.b16 %v329, %v328
      %v334 = vpack.c.b16 %v331, %v330
      %vm338 = vcmask 392192
      %v340 = vsel %vm338, %v304, 0
      %v343 = vsel %vm338, %v305, 0
      %v346 = vsel %vm338, %v306, 0
      %v349 = vsel %vm338, %v307, 0
      %v352 = vsel %vm338, %v308, 0
      %v355 = vsel %vm338, %v309, 0
      %v358 = vsel %vm338, %v310, 0
      %v361 = vsel %vm338, %v311, 0
      %v364 = vsel %vm338, %v312, 0
      %v367 = vsel %vm338, %v313, 0
      %v370 = vsel %vm338, %v314, 0
      %v373 = vsel %vm338, %v315, 0
      %v376 = vsel %vm338, %v316, 0
      %v379 = vsel %vm338, %v317, 0
      %v382 = vsel %vm338, %v318, 0
      %v385 = vsel %vm338, %v319, 0
      %387 = vmatpush.bf16.msra.mxu0 0
      %388 = vmatpush.bf16.msra.mxu0 0
      %389 = vmatpush.bf16.msra.mxu0 0
      %390 = vmatpush.bf16.msra.mxu0 0
      %391 = vmatpush.bf16.msra.mxu0 0
      %392 = vmatpush.bf16.msra.mxu0 %v334
      %393 = vmatpush.bf16.msra.mxu0 %v333
      %394 = vmatpush.bf16.msra.mxu0 %v332
      %395 = vmatmul.bf16.gmra.mxu0 %v340
      %v396 = vpop.f32.mrf.mxu0
      %v397 = vadd.f32 0.0, %v396
      %v398 = vpop.f32.mrf.mxu0
      %v399 = vadd.f32 0.0, %v398
      %400 = vmatmul.bf16.gmra.mxu0 %v343
      %v401 = vpop.f32.mrf.mxu0
      %v402 = vadd.f32 0.0, %v401
      %v403 = vpop.f32.mrf.mxu0
      %v404 = vadd.f32 0.0, %v403
      %405 = vmatmul.bf16.gmra.mxu0 %v346
      %v406 = vpop.f32.mrf.mxu0
      %v407 = vadd.f32 0.0, %v406
      %v408 = vpop.f32.mrf.mxu0
      %v409 = vadd.f32 0.0, %v408
      %410 = vmatmul.bf16.gmra.mxu0 %v349
      %v411 = vpop.f32.mrf.mxu0
      %v412 = vadd.f32 0.0, %v411
      %v413 = vpop.f32.mrf.mxu0
      %v414 = vadd.f32 0.0, %v413
      %415 = vmatmul.bf16.gmra.mxu0 %v352
      %v416 = vpop.f32.mrf.mxu0
      %v417 = vadd.f32 0.0, %v416
      %v418 = vpop.f32.mrf.mxu0
      %v419 = vadd.f32 0.0, %v418
      %420 = vmatmul.bf16.gmra.mxu0 %v355
      %v421 = vpop.f32.mrf.mxu0
      %v422 = vadd.f32 0.0, %v421
      %v423 = vpop.f32.mrf.mxu0
      %v424 = vadd.f32 0.0, %v423
      %425 = vmatmul.bf16.gmra.mxu0 %v358
      %v426 = vpop.f32.mrf.mxu0
      %v427 = vadd.f32 0.0, %v426
      %v428 = vpop.f32.mrf.mxu0
      %v429 = vadd.f32 0.0, %v428
      %430 = vmatmul.bf16.gmra.mxu0 %v361
      %v431 = vpop.f32.mrf.mxu0
      %v432 = vadd.f32 0.0, %v431
      %v433 = vpop.f32.mrf.mxu0
      %v434 = vadd.f32 0.0, %v433
      %435 = vmatmul.bf16.gmra.mxu0 %v364
      %v436 = vpop.f32.mrf.mxu0
      %v437 = vadd.f32 0.0, %v436
      %v438 = vpop.f32.mrf.mxu0
      %v439 = vadd.f32 0.0, %v438
      %440 = vmatmul.bf16.gmra.mxu0 %v367
      %v441 = vpop.f32.mrf.mxu0
      %v442 = vadd.f32 0.0, %v441
      %v443 = vpop.f32.mrf.mxu0
      %v444 = vadd.f32 0.0, %v443
      %445 = vmatmul.bf16.gmra.mxu0 %v370
      %v446 = vpop.f32.mrf.mxu0
      %v447 = vadd.f32 0.0, %v446
      %v448 = vpop.f32.mrf.mxu0
      %v449 = vadd.f32 0.0, %v448
      %450 = vmatmul.bf16.gmra.mxu0 %v373
      %v451 = vpop.f32.mrf.mxu0
      %v452 = vadd.f32 0.0, %v451
      %v453 = vpop.f32.mrf.mxu0
      %v454 = vadd.f32 0.0, %v453
      %455 = vmatmul.bf16.gmra.mxu0 %v376
      %v456 = vpop.f32.mrf.mxu0
      %v457 = vadd.f32 0.0, %v456
      %v458 = vpop.f32.mrf.mxu0
      %v459 = vadd.f32 0.0, %v458
      %460 = vmatmul.bf16.gmra.mxu0 %v379
      %v461 = vpop.f32.mrf.mxu0
      %v462 = vadd.f32 0.0, %v461
      %v463 = vpop.f32.mrf.mxu0
      %v464 = vadd.f32 0.0, %v463
      %465 = vmatmul.bf16.gmra.mxu0 %v382
      %v466 = vpop.f32.mrf.mxu0
      %v467 = vadd.f32 0.0, %v466
      %v468 = vpop.f32.mrf.mxu0
      %v469 = vadd.f32 0.0, %v468
      %470 = vmatmul.bf16.gmra.mxu0 %v385
      %v471 = vpop.f32.mrf.mxu0
      %v472 = vadd.f32 0.0, %v471
      %v473 = vpop.f32.mrf.mxu0
      %v474 = vadd.f32 0.0, %v473
      %475 = vdwg.mxu0
      %v476 = vld [vmem:[%s2] sm:$0x1]
      %v478 = vperm.slane %v476, 0
      %v480 = vmul.f32 %v397, %v478
      %v481 = vmul.f32 %v399, %v478
      %v482 = vmul.f32 %v402, %v478
      %v483 = vmul.f32 %v404, %v478
      %v484 = vmul.f32 %v407, %v478
      %v485 = vmul.f32 %v409, %v478
      %v486 = vmul.f32 %v412, %v478
      %v487 = vmul.f32 %v414, %v478
      %v488 = vmul.f32 %v417, %v478
      %v489 = vmul.f32 %v419, %v478
      %v490 = vmul.f32 %v422, %v478
      %v491 = vmul.f32 %v424, %v478
      %v492 = vmul.f32 %v427, %v478
      %v493 = vmul.f32 %v429, %v478
      %v494 = vmul.f32 %v432, %v478
      %v495 = vmul.f32 %v434, %v478
      %v496 = vmul.f32 %v437, %v478
      %v497 = vmul.f32 %v439, %v478
      %v498 = vmul.f32 %v442, %v478
      %v499 = vmul.f32 %v444, %v478
      %v500 = vmul.f32 %v447, %v478
      %v501 = vmul.f32 %v449, %v478
      %v502 = vmul.f32 %v452, %v478
      %v503 = vmul.f32 %v454, %v478
      %v504 = vmul.f32 %v457, %v478
      %v505 = vmul.f32 %v459, %v478
      %v506 = vmul.f32 %v462, %v478
      %v507 = vmul.f32 %v464, %v478
      %v508 = vmul.f32 %v467, %v478
      %v509 = vmul.f32 %v469, %v478
      %v510 = vmul.f32 %v472, %v478
      %v511 = vmul.f32 %v474, %v478
      %v512 = vld [vmem:[%s3] sm:$0x1]
      %v514 = vperm.slane %v512, 0
      %v516 = vadd.f32 %v480, %v514
      %v517 = vadd.f32 %v481, %v514
      %v518 = vadd.f32 %v482, %v514
      %v519 = vadd.f32 %v483, %v514
      %v520 = vadd.f32 %v484, %v514
      %v521 = vadd.f32 %v485, %v514
      %v522 = vadd.f32 %v486, %v514
      %v523 = vadd.f32 %v487, %v514
      %v524 = vadd.f32 %v488, %v514
      %v525 = vadd.f32 %v489, %v514
      %v526 = vadd.f32 %v490, %v514
      %v527 = vadd.f32 %v491, %v514
      %v528 = vadd.f32 %v492, %v514
      %v529 = vadd.f32 %v493, %v514
      %v530 = vadd.f32 %v494, %v514
      %v531 = vadd.f32 %v495, %v514
      %v532 = vadd.f32 %v496, %v514
      %v533 = vadd.f32 %v497, %v514
      %v534 = vadd.f32 %v498, %v514
      %v535 = vadd.f32 %v499, %v514
      %v536 = vadd.f32 %v500, %v514
      %v537 = vadd.f32 %v501, %v514
      %v538 = vadd.f32 %v502, %v514
      %v539 = vadd.f32 %v503, %v514
      %v540 = vadd.f32 %v504, %v514
      %v541 = vadd.f32 %v505, %v514
      %v542 = vadd.f32 %v506, %v514
      %v543 = vadd.f32 %v507, %v514
      %v544 = vadd.f32 %v508, %v514
      %v545 = vadd.f32 %v509, %v514
      %v546 = vadd.f32 %v510, %v514
      %v547 = vadd.f32 %v511, %v514
      %548 = vst [vmem:[%s199] sm:$0xff] %v516
      %549 = vst [vmem:[%s199 + $0x8] sm:$0xff] %v517
      %550 = vst [vmem:[%s199 + $0x10] sm:$0xff] %v518
      %551 = vst [vmem:[%s199 + $0x18] sm:$0xff] %v519
      %552 = vst [vmem:[%s199 + $0x20] sm:$0xff] %v520
      %553 = vst [vmem:[%s199 + $0x28] sm:$0xff] %v521
      %554 = vst [vmem:[%s199 + $0x30] sm:$0xff] %v522
      %555 = vst [vmem:[%s199 + $0x38] sm:$0xff] %v523
      %556 = vst [vmem:[%s199 + $0x40] sm:$0xff] %v524
      %557 = vst [vmem:[%s199 + $0x48] sm:$0xff] %v525
      %558 = vst [vmem:[%s199 + $0x50] sm:$0xff] %v526
      %559 = vst [vmem:[%s199 + $0x58] sm:$0xff] %v527
      %560 = vst [vmem:[%s199 + $0x60] sm:$0xff] %v528
      %561 = vst [vmem:[%s199 + $0x68] sm:$0xff] %v529
      %562 = vst [vmem:[%s199 + $0x70] sm:$0xff] %v530
      %563 = vst [vmem:[%s199 + $0x78] sm:$0xff] %v531
      %564 = vst [vmem:[%s199 + $0x80] sm:$0xff] %v532
      %565 = vst [vmem:[%s199 + $0x88] sm:$0xff] %v533
      %566 = vst [vmem:[%s199 + $0x90] sm:$0xff] %v534
      %567 = vst [vmem:[%s199 + $0x98] sm:$0xff] %v535
      %568 = vst [vmem:[%s199 + $0xa0] sm:$0xff] %v536
      %569 = vst [vmem:[%s199 + $0xa8] sm:$0xff] %v537
      %570 = vst [vmem:[%s199 + $0xb0] sm:$0xff] %v538
      %571 = vst [vmem:[%s199 + $0xb8] sm:$0xff] %v539
      %572 = vst [vmem:[%s199 + $0xc0] sm:$0xff] %v540
      %573 = vst [vmem:[%s199 + $0xc8] sm:$0xff] %v541
      %574 = vst [vmem:[%s199 + $0xd0] sm:$0xff] %v542
      %575 = vst [vmem:[%s199 + $0xd8] sm:$0xff] %v543
      %576 = vst [vmem:[%s199 + $0xe0] sm:$0xff] %v544
      %577 = vst [vmem:[%s199 + $0xe8] sm:$0xff] %v545
      %578 = vst [vmem:[%s199 + $0xf0] sm:$0xff] %v546
      %579 = vst [vmem:[%s199 + $0xf8] sm:$0xff] %v547
      %s580 = smul.u32 32, %s15
      %p581 = scmp.lt.s32.totalorder %s580, 63
      %s582 = scalar_select %p581, %s580, 63
      %s583 = smul.addr %s582, 8
      %s584 = scalar_lea.vmem %s4, %s583
      // Predicated region
      $region37: #{basic_conv2d.1} parent=35 // pred_check
        %p585 = pneg %p122
      $region38: #{basic_conv2d.1} parent=35 // pred_check_branch
        %587 = sbr.rel (%p585) target = $region40
      $region39: #{basic_conv2d.1} parent=35 // pred_region
        %s588 = smul.u32 32, %s15
      $region40: #{basic_conv2d.1} parent=35 // pred_fallthru
        _
    $region36: #{basic_conv2d.1} parent=5 // pred_fallthru
      _
    %p589 = scmp.le.s32.totalorder 2, %s10
    // Predicated region
    $region41: #{basic_conv2d.1} parent=5 // pred_check
      %p590 = pneg %p589
    $region42: #{basic_conv2d.1} parent=5 // pred_check_branch
      %592 = sbr.rel (%p590) target = $region44
    $region43: #{basic_conv2d.1} parent=5 // pred_region
      %s593 = ssub.s32 %s10, 2
      // Predicated region
      $region45: #{basic_conv2d.1} parent=43 // pred_check
        %p594 = pneg %p128
      $region46: #{basic_conv2d.1} parent=43 // pred_check_branch
        %596 = sbr.rel (%p594) target = $region48
      $region47: #{basic_conv2d.1} parent=43 // pred_region
        %s597 = smul.u32 32, %s16
        %p598 = scmp.lt.s32.totalorder %s597, 63
        %s599 = scalar_select %p598, %s597, 63
        %s600 = smul.addr %s599, 8
        %s601 = scalar_lea.vmem %s4, %s600
      $region48: #{basic_conv2d.1} parent=43 // pred_fallthru
        _
    $region44: #{basic_conv2d.1} parent=5 // pred_fallthru
      _
  $region6: #{basic_conv2d.1} parent=0 // loop_footer
    %s14 = sadd.s32 1, %s10
  $region7: #{basic_conv2d.1} parent=0 // loop_footer_branch
    %9 = sbr.rel target = $region3
  $region8: #{basic_conv2d.1} parent=0 // loop_exit
    _

</llo_original>
